<compile_context>
chip_gen: v7x
topology: tpu7x:2x2x1
jax: 0.10.0
libtpu: 0.0.40
codegen_flags: <defaults>
</compile_context>

<pallas_src>
import functools

import jax
import jax.numpy as jnp
import numpy as np
from jax.experimental import pallas as pl
from jax.experimental.pallas import tpu as pltpu


def _round_up(x: int, m: int) -> int:
    return ((x + m - 1) // m) * m


def _int_pow(x, n: int):
    """x**n via repeated squaring (n is a static non-negative int) -> VPU multiplies only."""
    if n == 0:
        return jnp.ones_like(x)
    result = None
    base = x
    while n > 0:
        if n & 1:
            result = base if result is None else result * base
        n >>= 1
        if n:
            base = base * base
    return result


def _angular_kernel(scal_ref, f_ij_ref, f_ik_ref, offs_ref, out_ref,
                    *, zeta: float, n_theta: int):
    # scal : (TN, 4) = [r_ij, r_ik, r_jk, mask]      f_* : (TN, G)
    # offs : (2, T*G) = [repeat(cos(theta_s), G); repeat(sin(theta_s), G)]
    # out  : (TN, T*G)
    scal = scal_ref[...]
    r_ij = scal[:, 0:1]
    r_ik = scal[:, 1:2]
    r_jk = scal[:, 2:3]
    alive = scal[:, 3:4] != 0.0                                    # (TN, 1) bool

    # law of cosines; where() (not multiply) so 0/0 on padded/masked rows never produces NaN
    cos_theta = (r_ij * r_ij + r_ik * r_ik - r_jk * r_jk) / (2.0 * r_ij * r_ik)
    cos_theta = jnp.where(alive, cos_theta, 0.0)

    u = 0.95 * cos_theta                                           # (TN, 1)
    s = jnp.sqrt(jnp.maximum(1.0 - u * u, 0.0))                    # sin(acos(u)), one sqrt/row

    cos_off = offs_ref[0:1, :]                                     # (1, T*G)
    sin_off = offs_ref[1:2, :]
    # cos(acos(u) - theta_s) = u*cos(theta_s) + sqrt(1-u^2)*sin(theta_s)  (lane-dense directly)
    x = 1.0 + (u * cos_off + s * sin_off)                          # (TN, T*G)

    if float(zeta).is_integer() and zeta >= 0:
        ang = _int_pow(x, int(zeta))                               # VPU, no EUP pow
    else:
        ang = jnp.power(x, zeta)                                   # fallback for non-integer zeta

    # fold 2^(1-zeta) scale and the triple mask into the narrow (TN, G) radial factor
    coef = jnp.where(alive, jnp.float32(2.0 ** (1.0 - zeta)), jnp.float32(0.0))
    radial = f_ij_ref[...] * f_ik_ref[...] * coef                  # (TN, G)
    radial_t = jnp.tile(radial, (1, n_theta))                      # (TN, T*G) lane tile

    out_ref[...] = ang * radial_t


def angular_distribution(r_ij, r_ik, r_jk, f_ij, f_ik, triple_mask=None,
                         *, offset_theta, zeta: float = 8.0, row_tile: int = 1024):
    """Pallas implementation of AngularDistribution.forward.

    r_ij/r_ik/r_jk/triple_mask : (B, At, Nbr)    f_ij/f_ik : (B, At, Nbr, G)
    returns (B, At, Nbr, n_theta * G) float32
    """
    B, At, Nbr = r_ij.shape
    G = f_ij.shape[-1]
    T = offset_theta.shape[0]
    N = B * At * Nbr
    f32 = jnp.float32

    assert row_tile % 8 == 0, "row_tile must be a multiple of 8"
    # big tile, but keep >= 2 grid steps when possible (megacore sharding)
    row_tile_eff = min(row_tile, max(8, _round_up((N + 1) // 2, 8)))
    N_pad = _round_up(N, row_tile_eff)
    pad = N_pad - N

    if triple_mask is None:
        mask_flat = jnp.ones((N,), f32)
    else:
        mask_flat = triple_mask.reshape(N).astype(f32)

    # pack the four per-triple scalars into one (N, 4) array -> single DMA stream
    scal = jnp.stack([r_ij.reshape(N).astype(f32),
                      r_ik.reshape(N).astype(f32),
                      r_jk.reshape(N).astype(f32),
                      mask_flat], axis=-1)                          # (N, 4)
    f_ij2 = f_ij.reshape(N, G).astype(f32)
    f_ik2 = f_ik.reshape(N, G).astype(f32)
    if pad:
        scal = jnp.pad(scal, ((0, pad), (0, 0)))                    # padded rows: mask = 0
        f_ij2 = jnp.pad(f_ij2, ((0, pad), (0, 0)))
        f_ik2 = jnp.pad(f_ik2, ((0, pad), (0, 0)))

    # parameter-derived constants, pre-expanded to the flat (T*G) output lane layout
    off = offset_theta.astype(f32)
    offs = jnp.stack([jnp.repeat(jnp.cos(off), G),
                      jnp.repeat(jnp.sin(off), G)], axis=0)         # (2, T*G)

    kernel = functools.partial(_angular_kernel, zeta=float(zeta), n_theta=T)

    grid = (N_pad // row_tile_eff,)
    row_spec = lambda cols: pl.BlockSpec((row_tile_eff, cols), lambda i: (i, 0))

    # explicit VMEM budget (scoped defaults: v5e 16 MiB, v6e/v7x 32 MiB) with double-buffering
    lane = 128
    lp = lambda c: _round_up(c, lane)
    per_step_bytes = 4 * row_tile_eff * (lp(4) + 2 * lp(G) + lp(T * G)) + 4 * 2 * lp(T * G)
    vmem_limit = int(min(100 * 2 ** 20, max(16 * 2 ** 20, 3 * per_step_bytes)))

    cost = pl.CostEstimate(
        flops=int(N_pad * (10 * T * G + 3 * G + 16)),
        transcendentals=int(N_pad),                                 # one sqrt per row
        bytes_accessed=int(4 * (N_pad * (4 + 2 * G + T * G) + 2 * T * G)),
    )

    out = pl.pallas_call(
        kernel,
        out_shape=jax.ShapeDtypeStruct((N_pad, T * G), f32),
        grid_spec=pltpu.PrefetchScalarGridSpec(
            num_scalar_prefetch=0,
            grid=grid,
            in_specs=[
                row_spec(4),                                        # packed r_ij/r_ik/r_jk/mask
                row_spec(G),                                        # f_ij
                row_spec(G),                                        # f_ik
                pl.BlockSpec((2, T * G), lambda i: (0, 0)),         # cos/sin offsets (replicated)
            ],
            out_specs=row_spec(T * G),
        ),
        compiler_params=pltpu.CompilerParams(
            dimension_semantics=("parallel",),
            vmem_limit_bytes=vmem_limit),
        cost_estimate=cost,
    )(scal, f_ij2, f_ik2, offs)

    return out[:N].reshape(B, At, Nbr, T * G)


def _reference(r_ij, r_ik, r_jk, f_ij, f_ik, triple_mask, offset_theta, zeta):
    # pure-JAX reference mirroring the PyTorch code (acos/cos/pow form)
    radial = f_ij * f_ik
    cos_theta = (r_ij**2 + r_ik**2 - r_jk**2) / (2.0 * r_ij * r_ik)
    if triple_mask is not None:
        cos_theta = jnp.where(triple_mask == 0, 0.0, cos_theta)
    diff = jnp.arccos(0.95 * cos_theta)[..., None] - offset_theta[None, None, None, :]
    ang = 2.0 ** (1.0 - zeta) * jnp.power(1.0 + jnp.cos(diff), zeta)
    if triple_mask is not None:
        m = (triple_mask != 0).astype(jnp.float32)[..., None]
        radial = radial * m
        ang = ang * m
    out = ang[..., :, None] * radial[..., None, :]
    B, At, Nbr = r_ij.shape
    return out.reshape(B, At, Nbr, -1)


if __name__ == "__main__":
    # Small shapes: B=2, At=4, Nbr_triple=8, n_gaussian_double=16, n_theta=8  (T*G = 128)
    B, At, Nbr, G, T = 2, 4, 8, 16, 8
    zeta = 8.0

    # deterministic parameter init (matches ThetaDistribution.__init__)
    offset_theta = jnp.asarray(
        np.linspace(0.0, 2.0 * np.pi, endpoint=False, num=T), dtype=jnp.float32)

    key = jax.random.PRNGKey(0)
    k1, k2, k3, k4, k5, k6 = jax.random.split(key, 6)
    r_ij = jax.random.uniform(k1, (B, At, Nbr), jnp.float32, 0.5, 3.0)
    r_ik = jax.random.uniform(k2, (B, At, Nbr), jnp.float32, 0.5, 3.0)
    # r_jk bounded so the triangle inequality roughly holds -> |cos_theta| <= 1
    r_jk = jnp.abs(r_ij - r_ik) + 0.1 + 0.8 * (r_ij + r_ik - jnp.abs(r_ij - r_ik) - 0.2) \
        * jax.random.uniform(k3, (B, At, Nbr), jnp.float32)
    f_ij = jax.random.uniform(k4, (B, At, Nbr, G), jnp.float32)
    f_ik = jax.random.uniform(k5, (B, At, Nbr, G), jnp.float32)
    triple_mask = (jax.random.uniform(k6, (B, At, Nbr)) > 0.2).astype(jnp.float32)

    out = angular_distribution(r_ij, r_ik, r_jk, f_ij, f_ik, triple_mask,
                               offset_theta=offset_theta, zeta=zeta)
    out = jax.block_until_ready(out)

    ref = _reference(r_ij, r_ik, r_jk, f_ij, f_ik, triple_mask, offset_theta, zeta)
    np.testing.assert_allclose(np.asarray(out), np.asarray(ref), rtol=1e-4, atol=1e-6)
    assert out.shape == (B, At, Nbr, T * G)

    print("KERNEL_OK")
</pallas_src>

<mosaic_0001>
module attributes {stable_mosaic.version = 11 : i64} {
  func.func @_angular_kernel(%arg0: i32, %arg1: memref<32x4xf32, #tpu.memory_space<vmem>>, %arg2: memref<32x16xf32, #tpu.memory_space<vmem>>, %arg3: memref<32x16xf32, #tpu.memory_space<vmem>>, %arg4: memref<2x128xf32, #tpu.memory_space<vmem>>, %arg5: memref<32x128xf32, #tpu.memory_space<vmem>>) attributes {dimension_semantics = [#tpu.dimension_semantics<parallel>], iteration_bounds = array<i64: 2>, scalar_prefetch = 0 : i64, scratch_operands = 0 : i64, tpu.core_type = #tpu.core_type<tc>, window_params = [{transform_indices = @transform_0, window_bounds = array<i64: 32, 4>}, {transform_indices = @transform_1, window_bounds = array<i64: 32, 16>}, {transform_indices = @transform_2, window_bounds = array<i64: 32, 16>}, {pipeline_mode = #tpu.pipeline_mode<synchronous>, transform_indices = @transform_3, window_bounds = array<i64: 2, 128>}, {transform_indices = @transform_4, window_bounds = array<i64: 32, 128>}]} {
    %c0 = arith.constant 0 : index
    %c0_0 = arith.constant 0 : index
    %0 = vector.load %arg1[%c0, %c0_0] : memref<32x4xf32, #tpu.memory_space<vmem>>, vector<32x4xf32>
    %1 = vector.extract_strided_slice %0 {offsets = [0, 0], sizes = [32, 1], strides = [1, 1]} : vector<32x4xf32> to vector<32x1xf32>
    %2 = vector.extract_strided_slice %0 {offsets = [0, 1], sizes = [32, 1], strides = [1, 1]} : vector<32x4xf32> to vector<32x1xf32>
    %3 = vector.extract_strided_slice %0 {offsets = [0, 2], sizes = [32, 1], strides = [1, 1]} : vector<32x4xf32> to vector<32x1xf32>
    %4 = vector.extract_strided_slice %0 {offsets = [0, 3], sizes = [32, 1], strides = [1, 1]} : vector<32x4xf32> to vector<32x1xf32>
    %cst = arith.constant 0.000000e+00 : f32
    %5 = vector.broadcast %cst : f32 to vector<32x1xf32>
    %6 = arith.cmpf one, %4, %5 : vector<32x1xf32>
    %7 = arith.mulf %1, %1 : vector<32x1xf32>
    %8 = arith.mulf %2, %2 : vector<32x1xf32>
    %9 = arith.addf %7, %8 : vector<32x1xf32>
    %10 = arith.mulf %3, %3 : vector<32x1xf32>
    %11 = arith.subf %9, %10 : vector<32x1xf32>
    %cst_1 = arith.constant 2.000000e+00 : f32
    %12 = vector.broadcast %cst_1 : f32 to vector<32x1xf32>
    %13 = arith.mulf %12, %1 : vector<32x1xf32>
    %14 = arith.mulf %13, %2 : vector<32x1xf32>
    %15 = arith.divf %11, %14 : vector<32x1xf32>
    %cst_2 = arith.constant 0.000000e+00 : f32
    %16 = vector.broadcast %cst_2 : f32 to vector<32x1xf32>
    %17 = arith.select %6, %15, %16 : vector<32x1xi1>, vector<32x1xf32>
    %cst_3 = arith.constant 0.949999988 : f32
    %18 = vector.broadcast %cst_3 : f32 to vector<32x1xf32>
    %19 = arith.mulf %18, %17 : vector<32x1xf32>
    %20 = arith.mulf %19, %19 : vector<32x1xf32>
    %cst_4 = arith.constant 1.000000e+00 : f32
    %21 = vector.broadcast %cst_4 : f32 to vector<32x1xf32>
    %22 = arith.subf %21, %20 : vector<32x1xf32>
    %cst_5 = arith.constant 0.000000e+00 : f32
    %23 = vector.broadcast %cst_5 : f32 to vector<32x1xf32>
    %24 = arith.maximumf %22, %23 : vector<32x1xf32>
    %25 = math.sqrt %24 : vector<32x1xf32>
    %c0_6 = arith.constant 0 : index
    %c0_7 = arith.constant 0 : index
    %26 = vector.load %arg4[%c0_6, %c0_7] : memref<2x128xf32, #tpu.memory_space<vmem>>, vector<1x128xf32>
    %c1 = arith.constant 1 : index
    %c0_8 = arith.constant 0 : index
    %27 = vector.load %arg4[%c1, %c0_8] : memref<2x128xf32, #tpu.memory_space<vmem>>, vector<1x128xf32>
    %28 = vector.broadcast %19 : vector<32x1xf32> to vector<32x128xf32>
    %29 = vector.broadcast %26 : vector<1x128xf32> to vector<32x128xf32>
    %30 = arith.mulf %28, %29 : vector<32x128xf32>
    %31 = vector.broadcast %25 : vector<32x1xf32> to vector<32x128xf32>
    %32 = vector.broadcast %27 : vector<1x128xf32> to vector<32x128xf32>
    %33 = arith.mulf %31, %32 : vector<32x128xf32>
    %34 = arith.addf %30, %33 : vector<32x128xf32>
    %cst_9 = arith.constant 1.000000e+00 : f32
    %35 = vector.broadcast %cst_9 : f32 to vector<32x128xf32>
    %36 = arith.addf %35, %34 : vector<32x128xf32>
    %37 = arith.mulf %36, %36 : vector<32x128xf32>
    %38 = arith.mulf %37, %37 : vector<32x128xf32>
    %39 = arith.mulf %38, %38 : vector<32x128xf32>
    %cst_10 = arith.constant 7.812500e-03 : f32
    %cst_11 = arith.constant 0.000000e+00 : f32
    %40 = vector.broadcast %cst_10 : f32 to vector<32x1xf32>
    %41 = vector.broadcast %cst_11 : f32 to vector<32x1xf32>
    %42 = arith.select %6, %40, %41 : vector<32x1xi1>, vector<32x1xf32>
    %c0_12 = arith.constant 0 : index
    %c0_13 = arith.constant 0 : index
    %43 = vector.load %arg2[%c0_12, %c0_13] : memref<32x16xf32, #tpu.memory_space<vmem>>, vector<32x16xf32>
    %c0_14 = arith.constant 0 : index
    %c0_15 = arith.constant 0 : index
    %44 = vector.load %arg3[%c0_14, %c0_15] : memref<32x16xf32, #tpu.memory_space<vmem>>, vector<32x16xf32>
    %45 = arith.mulf %43, %44 : vector<32x16xf32>
    %46 = vector.broadcast %42 : vector<32x1xf32> to vector<32x16xf32>
    %47 = arith.mulf %45, %46 : vector<32x16xf32>
    %48 = tpu.concatenate %47, %47, %47, %47, %47, %47, %47, %47 in 1 : vector<32x16xf32>, vector<32x16xf32>, vector<32x16xf32>, vector<32x16xf32>, vector<32x16xf32>, vector<32x16xf32>, vector<32x16xf32>, vector<32x16xf32> -> vector<32x128xf32>
    %49 = arith.mulf %39, %48 : vector<32x128xf32>
    %c0_16 = arith.constant 0 : index
    %c0_17 = arith.constant 0 : index
    %50 = vector.load %arg5[%c0_16, %c0_17] : memref<32x128xf32, #tpu.memory_space<vmem>>, vector<32x128xf32>
    tpu.vector_store %arg5[%c0_16, %c0_17], %49 {strides = array<i32>} : memref<32x128xf32, #tpu.memory_space<vmem>>, vector<32x128xf32>,
    return
  }
  func.func @transform_0(%arg0: i32) -> (i32, i32) {
    %c0_i32 = arith.constant 0 : i32
    %c0_i32_0 = arith.constant 0 : i32
    return %arg0, %c0_i32 : i32, i32
  }
  func.func @transform_1(%arg0: i32) -> (i32, i32) {
    %c0_i32 = arith.constant 0 : i32
    %c0_i32_0 = arith.constant 0 : i32
    return %arg0, %c0_i32 : i32, i32
  }
  func.func @transform_2(%arg0: i32) -> (i32, i32) {
    %c0_i32 = arith.constant 0 : i32
    %c0_i32_0 = arith.constant 0 : i32
    return %arg0, %c0_i32 : i32, i32
  }
  func.func @transform_3(%arg0: i32) -> (i32, i32) {
    %c0_i32 = arith.constant 0 : i32
    %c0_i32_0 = arith.constant 0 : i32
    %c0_i32_1 = arith.constant 0 : i32
    return %c0_i32, %c0_i32_0 : i32, i32
  }
  func.func @transform_4(%arg0: i32) -> (i32, i32) {
    %c0_i32 = arith.constant 0 : i32
    %c0_i32_0 = arith.constant 0 : i32
    return %arg0, %c0_i32 : i32, i32
  }
}

</mosaic_0001>

<llo_original>
// kernel: tpu_custom_call.1
$region0: #{tpu_custom_call.1}
  #allocation0 [shape = 'u32[]', space=smem, size = 0x4, offset = 0x4, fixed_abs, tag = 'smem constant byte address 0x4 - core index']
  #allocation1 [shape = 'u32[144,128]{1,0:T(1,128)}', space=vmem, size = 0x12000, scoped, tag = 'internal scratch']
  %s0 = inlined_call_operand.vmem [shape: f32[64,4], index: 0, kind: input, shape index: {}]
  %s1 = inlined_call_operand.vmem [shape: f32[64,16], index: 1, kind: input, shape index: {}]
  %s2 = inlined_call_operand.vmem [shape: f32[64,16], index: 2, kind: input, shape index: {}]
  %s3 = inlined_call_operand.vmem [shape: f32[2,128], index: 3, kind: input, shape index: {}]
  %s4 = inlined_call_operand.hbm [shape: f32[64,128], index: 4, kind: output, shape index: {}]
  %s5 = sld [smem:[#allocation0]]
  $region49: #{tpu_custom_call.1} parent=0
    _
  %s7 = ssub.s32 1, %s5
  %s8 = scalar_select 0, %s7, %s5
  $region1: #{tpu_custom_call.1} parent=0
    #allocation2 [shape = 'u8[32768]{0}', space=vmem, size = 0x8000, scoped, tag = 'output window, operand 0']
    #allocation3 [shape = 's32[2]{0}', space=sflag, size = 0x8, scoped, tag = 'scoped memory for tpu_custom_call.1']
    %9 = vsyncpa [#allocation3], 0
    %s10 = scalar_lea.sflag [#allocation3], 1
    %11 = vsyncpa %s10, 0
    loop: start=0, step=1, limit=4
    $region2: #{tpu_custom_call.1} parent=1 // loop_pre_header
      _
    $region3: #{tpu_custom_call.1} parent=1 // loop_header
      %s13 = sphi 0, %s17
      %p14 = scmp.ge.s32.totalorder %s13, 4
      %s23 = sphi 0, %s25
      %s26 = sphi 0, %s23
      %s27 = sphi 0, %s26
      %s43 = sphi 0, %s27
      %s49 = sphi 0, %s51
      %s52 = sphi 0, %s49
      %s53 = sphi 0, %s52
      %s69 = sphi 0, %s53
      %s75 = sphi 0, %s77
      %s78 = sphi 0, %s75
      %s79 = sphi 0, %s78
      %s95 = sphi 0, %s79
      %s99 = sphi 0, %s99
      %s101 = sphi 0, %s99
      %s102 = sphi 0, %s101
      %s116 = sphi 0, %s102
      %s122 = sphi 0, %s124
      %s125 = sphi 0, %s122
      %s126 = sphi 0, %s125
      %s142 = sphi 0, %s126
    $region4: #{tpu_custom_call.1} parent=1 // loop_header_branch
      %16 = sbr.rel (%p14) target = $region8
    $region5: #{tpu_custom_call.1} parent=1 // loop_body
      %s18 = ssub.s32 %s13, 1
      %s19 = ssub.s32 %s13, 2
      %s20 = sadd.s32 %s13, 1
      %s21 = ssub.s32 %s13, %s20
      %p22 = scmp.eq.s32.totalorder %s21, 0
      %s24 = sadd.s32 %s23, 1
      %s25 = scalar_select %p22, %s23, %s24
      %p28 = pneg %p22
      %p29 = scmp.eq.s32.totalorder %s13, 1
      %p30 = por %p28, %p29
      %p31 = scmp.ne.s32.totalorder %s23, %s26
      %p32 = scmp.eq.s32.totalorder %s13, 0
      %p33 = por %p31, %p32
      %p34 = scmp.ne.s32.totalorder %s23, %s26
      %p35 = scmp.eq.s32.totalorder %s18, 1
      %p36 = por %p34, %p35
      %p37 = scmp.ne.s32.totalorder %s26, %s27
      %p38 = scmp.eq.s32.totalorder %s18, 0
      %p39 = por %p37, %p38
      %p40 = scmp.ne.s32.totalorder %s26, %s27
      %p41 = scmp.eq.s32.totalorder %s19, 1
      %p42 = por %p40, %p41
      %p44 = scmp.ne.s32.totalorder %s27, %s43
      %p45 = scmp.eq.s32.totalorder %s19, 0
      %p46 = por %p44, %p45
      %s47 = ssub.s32 %s13, %s20
      %p48 = scmp.eq.s32.totalorder %s47, 0
      %s50 = sadd.s32 %s49, 1
      %s51 = scalar_select %p48, %s49, %s50
      %p54 = pneg %p48
      %p55 = scmp.eq.s32.totalorder %s13, 1
      %p56 = por %p54, %p55
      %p57 = scmp.ne.s32.totalorder %s49, %s52
      %p58 = scmp.eq.s32.totalorder %s13, 0
      %p59 = por %p57, %p58
      %p60 = scmp.ne.s32.totalorder %s49, %s52
      %p61 = scmp.eq.s32.totalorder %s18, 1
      %p62 = por %p60, %p61
      %p63 = scmp.ne.s32.totalorder %s52, %s53
      %p64 = scmp.eq.s32.totalorder %s18, 0
      %p65 = por %p63, %p64
      %p66 = scmp.ne.s32.totalorder %s52, %s53
      %p67 = scmp.eq.s32.totalorder %s19, 1
      %p68 = por %p66, %p67
      %p70 = scmp.ne.s32.totalorder %s53, %s69
      %p71 = scmp.eq.s32.totalorder %s19, 0
      %p72 = por %p70, %p71
      %s73 = ssub.s32 %s13, %s20
      %p74 = scmp.eq.s32.totalorder %s73, 0
      %s76 = sadd.s32 %s75, 1
      %s77 = scalar_select %p74, %s75, %s76
      %p80 = pneg %p74
      %p81 = scmp.eq.s32.totalorder %s13, 1
      %p82 = por %p80, %p81
      %p83 = scmp.ne.s32.totalorder %s75, %s78
      %p84 = scmp.eq.s32.totalorder %s13, 0
      %p85 = por %p83, %p84
      %p86 = scmp.ne.s32.totalorder %s75, %s78
      %p87 = scmp.eq.s32.totalorder %s18, 1
      %p88 = por %p86, %p87
      %p89 = scmp.ne.s32.totalorder %s78, %s79
      %p90 = scmp.eq.s32.totalorder %s18, 0
      %p91 = por %p89, %p90
      %p92 = scmp.ne.s32.totalorder %s78, %s79
      %p93 = scmp.eq.s32.totalorder %s19, 1
      %p94 = por %p92, %p93
      %p96 = scmp.ne.s32.totalorder %s79, %s95
      %p97 = scmp.eq.s32.totalorder %s19, 0
      %p98 = por %p96, %p97
      %s100 = sadd.s32 %s99, 1
      %p103 = scmp.eq.s32.totalorder %s13, 1
      %p104 = scmp.ne.s32.totalorder %s99, %s101
      %p105 = scmp.eq.s32.totalorder %s13, 0
      %p106 = por %p104, %p105
      %p107 = scmp.ne.s32.totalorder %s99, %s101
      %p108 = scmp.eq.s32.totalorder %s18, 1
      %p109 = por %p107, %p108
      %p110 = scmp.ne.s32.totalorder %s101, %s102
      %p111 = scmp.eq.s32.totalorder %s18, 0
      %p112 = por %p110, %p111
      %p113 = scmp.ne.s32.totalorder %s101, %s102
      %p114 = scmp.eq.s32.totalorder %s19, 1
      %p115 = por %p113, %p114
      %p117 = scmp.ne.s32.totalorder %s102, %s116
      %p118 = scmp.eq.s32.totalorder %s19, 0
      %p119 = por %p117, %p118
      %s120 = ssub.s32 %s13, %s20
      %p121 = scmp.eq.s32.totalorder %s120, 0
      %s123 = sadd.s32 %s122, 1
      %s124 = scalar_select %p121, %s122, %s123
      %p127 = pneg %p121
      %p128 = scmp.eq.s32.totalorder %s13, 1
      %p129 = por %p127, %p128
      %p130 = scmp.ne.s32.totalorder %s122, %s125
      %p131 = scmp.eq.s32.totalorder %s13, 0
      %p132 = por %p130, %p131
      %p133 = scmp.ne.s32.totalorder %s122, %s125
      %p134 = scmp.eq.s32.totalorder %s18, 1
      %p135 = por %p133, %p134
      %p136 = scmp.ne.s32.totalorder %s125, %s126
      %p137 = scmp.eq.s32.totalorder %s18, 0
      %p138 = por %p136, %p137
      %p139 = scmp.ne.s32.totalorder %s125, %s126
      %p140 = scmp.eq.s32.totalorder %s19, 1
      %p141 = por %p139, %p140
      %p143 = scmp.ne.s32.totalorder %s126, %s142
      %p144 = scmp.eq.s32.totalorder %s19, 0
      %p145 = por %p143, %p144
      %p146 = scmp.le.s32.totalorder 1, %s13
      %p147 = scmp.lt.s32.totalorder %s13, 3
      %p148 = pnand %p146, %p147
      %p149 = pneg %p148
      // Predicated region
      $region9: #{tpu_custom_call.1} parent=5 // pred_check
        _
      $region10: #{tpu_custom_call.1} parent=5 // pred_check_branch
        %151 = sbr.rel (%p148) target = $region12
      $region11: #{tpu_custom_call.1} parent=5 // pred_region
        %s152 = ssub.s32 %s13, 1
        // Predicated region
        $region13: #{tpu_custom_call.1} parent=11 // pred_check
          %p153 = pneg %p112
        $region14: #{tpu_custom_call.1} parent=11 // pred_check_branch
          %155 = sbr.rel (%p153) target = $region16
        $region15: #{tpu_custom_call.1} parent=11 // pred_region
          _
        $region16: #{tpu_custom_call.1} parent=11 // pred_fallthru
          _
      $region12: #{tpu_custom_call.1} parent=5 // pred_fallthru
        _
      %p156 = scmp.lt.s32.totalorder %s13, 2
      // Predicated region
      $region17: #{tpu_custom_call.1} parent=5 // pred_check
        %p157 = pneg %p156
      $region18: #{tpu_custom_call.1} parent=5 // pred_check_branch
        %159 = sbr.rel (%p157) target = $region20
      $region19: #{tpu_custom_call.1} parent=5 // pred_region
        // Predicated region
        $region21: #{tpu_custom_call.1} parent=19 // pred_check
          %p160 = pneg %p33
        $region22: #{tpu_custom_call.1} parent=19 // pred_check_branch
          %162 = sbr.rel (%p160) target = $region24
        $region23: #{tpu_custom_call.1} parent=19 // pred_region
          %s163 = smul.u32 4, %s13
          %p164 = scmp.lt.s32.totalorder %s163, 7
          %s165 = scalar_select %p164, %s163, 7
          %s166 = smul.addr %s165, 8
          %s167 = scalar_lea.vmem %s0, %s166
          %s168 = smul.u32 4, %s13
        $region24: #{tpu_custom_call.1} parent=19 // pred_fallthru
          _
        // Predicated region
        $region25: #{tpu_custom_call.1} parent=19 // pred_check
          %p169 = pneg %p59
        $region26: #{tpu_custom_call.1} parent=19 // pred_check_branch
          %171 = sbr.rel (%p169) target = $region28
        $region27: #{tpu_custom_call.1} parent=19 // pred_region
          %s172 = smul.u32 4, %s13
          %p173 = scmp.lt.s32.totalorder %s172, 7
          %s174 = scalar_select %p173, %s172, 7
          %s175 = smul.addr %s174, 8
          %s176 = scalar_lea.vmem %s1, %s175
          %s177 = smul.u32 4, %s13
        $region28: #{tpu_custom_call.1} parent=19 // pred_fallthru
          _
        // Predicated region
        $region29: #{tpu_custom_call.1} parent=19 // pred_check
          %p178 = pneg %p85
        $region30: #{tpu_custom_call.1} parent=19 // pred_check_branch
          %180 = sbr.rel (%p178) target = $region32
        $region31: #{tpu_custom_call.1} parent=19 // pred_region
          %s181 = smul.u32 4, %s13
          %p182 = scmp.lt.s32.totalorder %s181, 7
          %s183 = scalar_select %p182, %s181, 7
          %s184 = smul.addr %s183, 8
          %s185 = scalar_lea.vmem %s2, %s184
          %s186 = smul.u32 4, %s13
        $region32: #{tpu_custom_call.1} parent=19 // pred_fallthru
          _
      $region20: #{tpu_custom_call.1} parent=5 // pred_fallthru
        _
      %p187 = scmp.le.s32.totalorder 1, %s13
      %p188 = scmp.lt.s32.totalorder %s13, 3
      %p189 = pnand %p187, %p188
      %p190 = pneg %p189
      // Predicated region
      $region33: #{tpu_custom_call.1} parent=5 // pred_check
        _
      $region34: #{tpu_custom_call.1} parent=5 // pred_check_branch
        %192 = sbr.rel (%p189) target = $region36
      $region35: #{tpu_custom_call.1} parent=5 // pred_region
        %s193 = ssub.s32 %s13, 1
        %s194 = smul.u32 4, %s18
        %p195 = scmp.lt.s32.totalorder %s194, 7
        %s196 = scalar_select %p195, %s194, 7
        %s197 = smul.addr %s196, 8
        %s198 = scalar_lea.vmem %s0, %s197
        %p199 = pneg %p39
        %p200 = pneg %p36
        %s201 = smul.u32 4, %s18
        %p202 = scmp.lt.s32.totalorder %s201, 7
        %s203 = scalar_select %p202, %s201, 7
        %s204 = smul.addr %s203, 8
        %s205 = scalar_lea.vmem %s1, %s204
        %p206 = pneg %p65
        %p207 = pneg %p62
        %s208 = smul.u32 4, %s18
        %p209 = scmp.lt.s32.totalorder %s208, 7
        %s210 = scalar_select %p209, %s208, 7
        %s211 = smul.addr %s210, 8
        %s212 = scalar_lea.vmem %s2, %s211
        %p213 = pneg %p91
        %p214 = pneg %p88
        %p215 = pneg %p112
        %p216 = pneg %p109
        %p217 = pneg %p138
        %p218 = pneg %p135
        %s219 = sand.u32 %s125, 1
        %s220 = scalar_lea.sflag [#allocation3], %s219
        %s221 = sand.u32 %s125, 1
        %s222 = smul.addr %s221, 32
        %s223 = scalar_lea.vmem [#allocation2], %s222
        %s224 = smul.u32 4, %s18
        %p225 = scmp.lt.s32.totalorder %s224, 7
        %s226 = scalar_select %p225, %s224, 7
        %s227 = smul.addr %s226, 8
        %s228 = scalar_lea.vmem %s0, %s227
        %s229 = smul.u32 4, %s18
        %s230 = smul.u32 4, %s18
        %p231 = scmp.lt.s32.totalorder %s230, 7
        %s232 = scalar_select %p231, %s230, 7
        %s233 = smul.addr %s232, 8
        %s234 = scalar_lea.vmem %s1, %s233
        %s235 = smul.u32 4, %s18
        %s236 = smul.u32 4, %s18
        %p237 = scmp.lt.s32.totalorder %s236, 7
        %s238 = scalar_select %p237, %s236, 7
        %s239 = smul.addr %s238, 8
        %s240 = scalar_lea.vmem %s2, %s239
        %s241 = smul.u32 4, %s18
        %s242 = smul.u32 4, %s18
        %v243 = vld [vmem:[%s228] sm:$0xff]
        %v244 = vld [vmem:[%s228 + $0x8] sm:$0xff]
        %v245 = vld [vmem:[%s228 + $0x10] sm:$0xff]
        %v246 = vld [vmem:[%s228 + $0x18] sm:$0xff]
        %vm247 = vcmp.ne.f32.partialorder %v243, 0.0
        %vm248 = vcmp.ne.f32.partialorder %v244, 0.0
        %vm249 = vcmp.ne.f32.partialorder %v245, 0.0
        %vm250 = vcmp.ne.f32.partialorder %v246, 0.0
        %v251 = vmul.f32 %v243, %v243
        %v252 = vmul.f32 %v244, %v244
        %v253 = vmul.f32 %v245, %v245
        %v254 = vmul.f32 %v246, %v246
        %259 = vrot.lane.b32.xlu0 %v251, 127
        %v260 = vpop.permute.xlu0 %259
        %261 = vrot.lane.b32.xlu0 %v252, 127
        %v262 = vpop.permute.xlu0 %261
        %263 = vrot.lane.b32.xlu0 %v253, 127
        %v264 = vpop.permute.xlu0 %263
        %265 = vrot.lane.b32.xlu0 %v254, 127
        %v266 = vpop.permute.xlu0 %265
        %v271 = vadd.f32 %v251, %v260
        %v272 = vadd.f32 %v252, %v262
        %v273 = vadd.f32 %v253, %v264
        %v274 = vadd.f32 %v254, %v266
        %275 = vrot.lane.b32.xlu0 %v251, 126
        %v276 = vpop.permute.xlu0 %275
        %277 = vrot.lane.b32.xlu0 %v252, 126
        %v278 = vpop.permute.xlu0 %277
        %279 = vrot.lane.b32.xlu0 %v253, 126
        %v280 = vpop.permute.xlu0 %279
        %281 = vrot.lane.b32.xlu0 %v254, 126
        %v282 = vpop.permute.xlu0 %281
        %v287 = vsub.f32 %v271, %v276
        %v288 = vsub.f32 %v272, %v278
        %v289 = vsub.f32 %v273, %v280
        %v290 = vsub.f32 %v274, %v282
        %v291 = vmul.f32 %v243, 2.0
        %v292 = vmul.f32 %v244, 2.0
        %v293 = vmul.f32 %v245, 2.0
        %v294 = vmul.f32 %v246, 2.0
        %299 = vrot.lane.b32.xlu0 %v243, 127
        %v300 = vpop.permute.xlu0 %299
        %301 = vrot.lane.b32.xlu0 %v244, 127
        %v302 = vpop.permute.xlu0 %301
        %303 = vrot.lane.b32.xlu0 %v245, 127
        %v304 = vpop.permute.xlu0 %303
        %305 = vrot.lane.b32.xlu0 %v246, 127
        %v306 = vpop.permute.xlu0 %305
        %v311 = vmul.f32 %v291, %v300
        %v312 = vmul.f32 %v292, %v302
        %v313 = vmul.f32 %v293, %v304
        %v314 = vmul.f32 %v294, %v306
        %v315 = vrcp.pop %v311
        %v316 = vmul.f32 %v287, %v315
        %v317 = vrcp.pop %v312
        %v318 = vmul.f32 %v288, %v317
        %v319 = vrcp.pop %v313
        %v320 = vmul.f32 %v289, %v319
        %v321 = vrcp.pop %v314
        %v322 = vmul.f32 %v290, %v321
        %327 = vrot.lane.b32.xlu0 %v316, 3
        %v328 = vpop.permute.xlu0 %327
        %329 = vrot.lane.b32.xlu0 %v318, 3
        %v330 = vpop.permute.xlu0 %329
        %331 = vrot.lane.b32.xlu0 %v320, 3
        %v332 = vpop.permute.xlu0 %331
        %333 = vrot.lane.b32.xlu0 %v322, 3
        %v334 = vpop.permute.xlu0 %333
        %v339 = vsel %vm247, %v328, 0.0
        %v340 = vsel %vm248, %v330, 0.0
        %v341 = vsel %vm249, %v332, 0.0
        %v342 = vsel %vm250, %v334, 0.0
        %v343 = vmul.f32 %v339, 0.95
        %v344 = vmul.f32 %v340, 0.95
        %v345 = vmul.f32 %v341, 0.95
        %v346 = vmul.f32 %v342, 0.95
        %v347 = vmul.f32 %v343, %v343
        %v348 = vmul.f32 %v344, %v344
        %v349 = vmul.f32 %v345, %v345
        %v350 = vmul.f32 %v346, %v346
        %v351 = vsub.f32 1.0, %v347
        %v352 = vsub.f32 1.0, %v348
        %v353 = vsub.f32 1.0, %v349
        %v354 = vsub.f32 1.0, %v350
        %v355 = vmax.f32 %v351, 0.0
        %v356 = vmax.f32 %v352, 0.0
        %v357 = vmax.f32 %v353, 0.0
        %v358 = vmax.f32 %v354, 0.0
        %v359 = vrsqrt.pop %v355
        %v360 = vmul.f32 %v355, %v359
        %vm361 = vcmp.eq.f32.partialorder %v355, inf
        %v362 = vsel %vm361, %v355, %v360
        %vm363 = vcmp.eq.f32.partialorder %v355, 0.0
        %v364 = vand.u32 %v355, 2147483648
        %v365 = vsel %vm363, %v364, %v362
        %v366 = vrsqrt.pop %v356
        %v367 = vmul.f32 %v356, %v366
        %vm368 = vcmp.eq.f32.partialorder %v356, inf
        %v369 = vsel %vm368, %v356, %v367
        %vm370 = vcmp.eq.f32.partialorder %v356, 0.0
        %v371 = vand.u32 %v356, 2147483648
        %v372 = vsel %vm370, %v371, %v369
        %v373 = vrsqrt.pop %v357
        %v374 = vmul.f32 %v357, %v373
        %vm375 = vcmp.eq.f32.partialorder %v357, inf
        %v376 = vsel %vm375, %v357, %v374
        %vm377 = vcmp.eq.f32.partialorder %v357, 0.0
        %v378 = vand.u32 %v357, 2147483648
        %v379 = vsel %vm377, %v378, %v376
        %v380 = vrsqrt.pop %v358
        %v381 = vmul.f32 %v358, %v380
        %vm382 = vcmp.eq.f32.partialorder %v358, inf
        %v383 = vsel %vm382, %v358, %v381
        %vm384 = vcmp.eq.f32.partialorder %v358, 0.0
        %v385 = vand.u32 %v358, 2147483648
        %v386 = vsel %vm384, %v385, %v383
        %v387 = vld [vmem:[%s3] sm:$0x1]
        %v388 = vld [vmem:[%s3 + $0x1] sm:$0x1]
        %390 = vset.pattern.permute.xlu0 3
        %391 = vperm.xlu0 %390, %v343
        %v392 = vpop.permute.xlu0 %391
        %395 = vset.pattern.permute.xlu0 3
        %396 = vperm.xlu0 %395, %v344
        %v397 = vpop.permute.xlu0 %396
        %400 = vset.pattern.permute.xlu0 3
        %401 = vperm.xlu0 %400, %v345
        %v402 = vpop.permute.xlu0 %401
        %405 = vset.pattern.permute.xlu0 3
        %406 = vperm.xlu0 %405, %v346
        %v407 = vpop.permute.xlu0 %406
        %v409 = vlaneseq
        %v410 = vshrl.u32 %v409, 7
        %v411 = vsub.s32 0, %v410
        %v412 = vrot.slane %v387, %v411
        %v413 = vmul.f32 %v392, %v412
        %v414 = vmul.f32 %v397, %v412
        %v415 = vmul.f32 %v402, %v412
        %v416 = vmul.f32 %v407, %v412
        %418 = vset.pattern.permute.xlu0 3
        %419 = vperm.xlu0 %418, %v365
        %v420 = vpop.permute.xlu0 %419
        %423 = vset.pattern.permute.xlu0 3
        %424 = vperm.xlu0 %423, %v372
        %v425 = vpop.permute.xlu0 %424
        %428 = vset.pattern.permute.xlu0 3
        %429 = vperm.xlu0 %428, %v379
        %v430 = vpop.permute.xlu0 %429
        %433 = vset.pattern.permute.xlu0 3
        %434 = vperm.xlu0 %433, %v386
        %v435 = vpop.permute.xlu0 %434
        %v437 = vlaneseq
        %v438 = vshrl.u32 %v437, 7
        %v439 = vsub.s32 0, %v438
        %v440 = vrot.slane %v388, %v439
        %v441 = vmul.f32 %v420, %v440
        %v442 = vmul.f32 %v425, %v440
        %v443 = vmul.f32 %v430, %v440
        %v444 = vmul.f32 %v435, %v440
        %v445 = vadd.f32 %v413, %v441
        %v446 = vadd.f32 %v414, %v442
        %v447 = vadd.f32 %v415, %v443
        %v448 = vadd.f32 %v416, %v444
        %v449 = vadd.f32 %v445, 1.0
        %v450 = vadd.f32 %v446, 1.0
        %v451 = vadd.f32 %v447, 1.0
        %v452 = vadd.f32 %v448, 1.0
        %v453 = vmul.f32 %v449, %v449
        %v454 = vmul.f32 %v450, %v450
        %v455 = vmul.f32 %v451, %v451
        %v456 = vmul.f32 %v452, %v452
        %v457 = vmul.f32 %v453, %v453
        %v458 = vmul.f32 %v454, %v454
        %v459 = vmul.f32 %v455, %v455
        %v460 = vmul.f32 %v456, %v456
        %v461 = vmul.f32 %v457, %v457
        %v462 = vmul.f32 %v458, %v458
        %v463 = vmul.f32 %v459, %v459
        %v464 = vmul.f32 %v460, %v460
        %v465 = vsel %vm247, 0.0078125, 0.0
        %v466 = vsel %vm248, 0.0078125, 0.0
        %v467 = vsel %vm249, 0.0078125, 0.0
        %v468 = vsel %vm250, 0.0078125, 0.0
        %v469 = vld [vmem:[%s234] sm:$0xff]
        %v470 = vld [vmem:[%s234 + $0x8] sm:$0xff]
        %v471 = vld [vmem:[%s234 + $0x10] sm:$0xff]
        %v472 = vld [vmem:[%s234 + $0x18] sm:$0xff]
        %v473 = vld [vmem:[%s240] sm:$0xff]
        %v474 = vld [vmem:[%s240 + $0x8] sm:$0xff]
        %v475 = vld [vmem:[%s240 + $0x10] sm:$0xff]
        %v476 = vld [vmem:[%s240 + $0x18] sm:$0xff]
        %v477 = vmul.f32 %v469, %v473
        %v478 = vmul.f32 %v470, %v474
        %v479 = vmul.f32 %v471, %v475
        %v480 = vmul.f32 %v472, %v476
        %482 = vset.pattern.permute.xlu0 3
        %483 = vperm.xlu0 %482, %v465
        %v484 = vpop.permute.xlu0 %483
        %487 = vset.pattern.permute.xlu0 3
        %488 = vperm.xlu0 %487, %v466
        %v489 = vpop.permute.xlu0 %488
        %492 = vset.pattern.permute.xlu0 3
        %493 = vperm.xlu0 %492, %v467
        %v494 = vpop.permute.xlu0 %493
        %497 = vset.pattern.permute.xlu0 3
        %498 = vperm.xlu0 %497, %v468
        %v499 = vpop.permute.xlu0 %498
        %v501 = vmul.f32 %v477, %v484
        %v502 = vmul.f32 %v478, %v489
        %v503 = vmul.f32 %v479, %v494
        %v504 = vmul.f32 %v480, %v499
        %509 = vrot.lane.b32.xlu0 %v501, 16
        %v510 = vpop.permute.xlu0 %509
        %511 = vrot.lane.b32.xlu0 %v502, 16
        %v512 = vpop.permute.xlu0 %511
        %513 = vrot.lane.b32.xlu0 %v503, 16
        %v514 = vpop.permute.xlu0 %513
        %515 = vrot.lane.b32.xlu0 %v504, 16
        %v516 = vpop.permute.xlu0 %515
        %521 = vrot.lane.b32.xlu0 %v501, 32
        %v522 = vpop.permute.xlu0 %521
        %523 = vrot.lane.b32.xlu0 %v502, 32
        %v524 = vpop.permute.xlu0 %523
        %525 = vrot.lane.b32.xlu0 %v503, 32
        %v526 = vpop.permute.xlu0 %525
        %527 = vrot.lane.b32.xlu0 %v504, 32
        %v528 = vpop.permute.xlu0 %527
        %533 = vrot.lane.b32.xlu0 %v501, 48
        %v534 = vpop.permute.xlu0 %533
        %535 = vrot.lane.b32.xlu0 %v502, 48
        %v536 = vpop.permute.xlu0 %535
        %537 = vrot.lane.b32.xlu0 %v503, 48
        %v538 = vpop.permute.xlu0 %537
        %539 = vrot.lane.b32.xlu0 %v504, 48
        %v540 = vpop.permute.xlu0 %539
        %545 = vrot.lane.b32.xlu0 %v501, 64
        %v546 = vpop.permute.xlu0 %545
        %547 = vrot.lane.b32.xlu0 %v502, 64
        %v548 = vpop.permute.xlu0 %547
        %549 = vrot.lane.b32.xlu0 %v503, 64
        %v550 = vpop.permute.xlu0 %549
        %551 = vrot.lane.b32.xlu0 %v504, 64
        %v552 = vpop.permute.xlu0 %551
        %557 = vrot.lane.b32.xlu0 %v501, 80
        %v558 = vpop.permute.xlu0 %557
        %559 = vrot.lane.b32.xlu0 %v502, 80
        %v560 = vpop.permute.xlu0 %559
        %561 = vrot.lane.b32.xlu0 %v503, 80
        %v562 = vpop.permute.xlu0 %561
        %563 = vrot.lane.b32.xlu0 %v504, 80
        %v564 = vpop.permute.xlu0 %563
        %569 = vrot.lane.b32.xlu0 %v501, 96
        %v570 = vpop.permute.xlu0 %569
        %571 = vrot.lane.b32.xlu0 %v502, 96
        %v572 = vpop.permute.xlu0 %571
        %573 = vrot.lane.b32.xlu0 %v503, 96
        %v574 = vpop.permute.xlu0 %573
        %575 = vrot.lane.b32.xlu0 %v504, 96
        %v576 = vpop.permute.xlu0 %575
        %581 = vrot.lane.b32.xlu0 %v501, 112
        %v582 = vpop.permute.xlu0 %581
        %583 = vrot.lane.b32.xlu0 %v502, 112
        %v584 = vpop.permute.xlu0 %583
        %585 = vrot.lane.b32.xlu0 %v503, 112
        %v586 = vpop.permute.xlu0 %585
        %587 = vrot.lane.b32.xlu0 %v504, 112
        %v588 = vpop.permute.xlu0 %587
        %vm593 = vcmask 130048
        %v594 = vsel %vm593, %v501, %v510
        %v595 = vsel %vm593, %v502, %v512
        %v596 = vsel %vm593, %v503, %v514
        %v597 = vsel %vm593, %v504, %v516
        %vm598 = vcmask 261120
        %v599 = vsel %vm598, %v594, %v522
        %v600 = vsel %vm598, %v595, %v524
        %v601 = vsel %vm598, %v596, %v526
        %v602 = vsel %vm598, %v597, %v528
        %vm603 = vcmask 392192
        %v604 = vsel %vm603, %v599, %v534
        %v605 = vsel %vm603, %v600, %v536
        %v606 = vsel %vm603, %v601, %v538
        %v607 = vsel %vm603, %v602, %v540
        %vm608 = vcmask 523264
        %v609 = vsel %vm608, %v604, %v546
        %v610 = vsel %vm608, %v605, %v548
        %v611 = vsel %vm608, %v606, %v550
        %v612 = vsel %vm608, %v607, %v552
        %vm613 = vcmask 654336
        %v614 = vsel %vm613, %v609, %v558
        %v615 = vsel %vm613, %v610, %v560
        %v616 = vsel %vm613, %v611, %v562
        %v617 = vsel %vm613, %v612, %v564
        %vm618 = vcmask 785408
        %v619 = vsel %vm618, %v614, %v570
        %v620 = vsel %vm618, %v615, %v572
        %v621 = vsel %vm618, %v616, %v574
        %v622 = vsel %vm618, %v617, %v576
        %vm623 = vcmask 916480
        %v624 = vsel %vm623, %v619, %v582
        %v625 = vsel %vm623, %v620, %v584
        %v626 = vsel %vm623, %v621, %v586
        %v627 = vsel %vm623, %v622, %v588
        %v628 = vmul.f32 %v461, %v624
        %v629 = vmul.f32 %v462, %v625
        %v630 = vmul.f32 %v463, %v626
        %v631 = vmul.f32 %v464, %v627
        %632 = vst [vmem:[%s223] sm:$0xff] %v628
        %633 = vst [vmem:[%s223 + $0x8] sm:$0xff] %v629
        %634 = vst [vmem:[%s223 + $0x10] sm:$0xff] %v630
        %635 = vst [vmem:[%s223 + $0x18] sm:$0xff] %v631
        %s636 = sand.u32 %s125, 1
        %s637 = scalar_lea.sflag [#allocation3], %s636
        %s638 = sand.u32 %s125, 1
        %s639 = smul.addr %s638, 32
        %s640 = scalar_lea.vmem [#allocation2], %s639
        // Predicated region
        $region37: #{tpu_custom_call.1} parent=35 // pred_check
          %p641 = pneg %p135
        $region38: #{tpu_custom_call.1} parent=35 // pred_check_branch
          %643 = sbr.rel (%p641) target = $region40
        $region39: #{tpu_custom_call.1} parent=35 // pred_region
          %s644 = smul.u32 4, %s18
          %s646 = ssub.s32 512, 512
          %647 = vsyncadd %s637, %s646
          %s648 = smul.addr %s644, 128
          %s649 = scalar_lea.hbm %s4, %s648
          %s650 = sshll.u32 %s640, 4
          %s651 = int_to_ptr.vmem [resolvable:$true] %s650
          %656 = dma.vmem_to_hbm [thread:$0]  %s651, 512, %s649, %s637, 128, 128, 8
        $region40: #{tpu_custom_call.1} parent=35 // pred_fallthru
          _
      $region36: #{tpu_custom_call.1} parent=5 // pred_fallthru
        _
      %p657 = scmp.le.s32.totalorder 2, %s13
      // Predicated region
      $region41: #{tpu_custom_call.1} parent=5 // pred_check
        %p658 = pneg %p657
      $region42: #{tpu_custom_call.1} parent=5 // pred_check_branch
        %660 = sbr.rel (%p658) target = $region44
      $region43: #{tpu_custom_call.1} parent=5 // pred_region
        %s661 = ssub.s32 %s13, 2
        // Predicated region
        $region45: #{tpu_custom_call.1} parent=43 // pred_check
          %p662 = pneg %p141
        $region46: #{tpu_custom_call.1} parent=43 // pred_check_branch
          %664 = sbr.rel (%p662) target = $region48
        $region47: #{tpu_custom_call.1} parent=43 // pred_region
          %s665 = sand.u32 %s126, 1
          %s666 = scalar_lea.sflag [#allocation3], %s665
          %s667 = sand.u32 %s126, 1
          %s668 = smul.addr %s667, 32
          %s669 = scalar_lea.vmem [#allocation2], %s668
          %670 = dma.done %s666, 512
        $region48: #{tpu_custom_call.1} parent=43 // pred_fallthru
          _
      $region44: #{tpu_custom_call.1} parent=5 // pred_fallthru
        _
    $region6: #{tpu_custom_call.1} parent=1 // loop_footer
      %s17 = sadd.s32 1, %s13
    $region7: #{tpu_custom_call.1} parent=1 // loop_footer_branch
      %12 = sbr.rel target = $region3
    $region8: #{tpu_custom_call.1} parent=1 // loop_exit
      _
    %671 = vsyncpa [#allocation3], 1
    %s672 = scalar_lea.sflag [#allocation3], 1
    %673 = vsyncpa %s672, 1

</llo_original>
